<compile_context>
chip_gen: v7x
topology: tpu7x:2x2x1
jax: 0.10.0
libtpu: 0.0.40
codegen_flags: <defaults>
</compile_context>

<pallas_src>
import numpy as np
import jax
import jax.numpy as jnp
from jax.experimental import pallas as pl
from jax.experimental.pallas import tpu as pltpu

# Waymo-style interaction prediction config (config['observed'], config['total'])
OBSERVED = 11
TOTAL = 91
PREDICT = TOTAL - OBSERVED      # 80 predicted steps -> stride-5 slice has 16 points

_OUT_LANES = 16                 # single lane-dense result vector (1, 16)

# Compile-time stride-5 / horizon selection masks over the 80 predicted steps.
#   out[:, 4:time*10:5]  <=>  t % 5 == 4 and t < time*10
# Split into disjoint segments so the three horizons are prefix sums.
_t = np.arange(PREDICT)
_sel = (_t % 5) == 4
_SEGS = np.stack(
    [
        (_sel & (_t < 30)).astype(np.float32),                 # 3s points
        (_sel & (_t >= 30) & (_t < 50)).astype(np.float32),    # extra 5s points
        (_sel & (_t >= 50)).astype(np.float32),                # extra 8s points
    ],
    axis=0,
)  # (3, PREDICT)

_VMEM = pl.BlockSpec(memory_space=pltpu.MemorySpace.VMEM)


def _loss_kernel(logits_ref, labels_ref, segs_ref,
                 out_a_ref, y_a_ref, valid_a_ref,
                 out_b_ref, y_b_ref, valid_b_ref,
                 res_ref):
    # ------------------- relation cross entropy (mean reduction) -------------
    logits = logits_ref[...].astype(jnp.float32)                 # (B, C)
    labels = labels_ref[...]                                     # (B, 1) int32
    b = logits.shape[0]
    m = jnp.max(logits, axis=-1, keepdims=True)
    z = logits - m
    lse = jnp.log(jnp.sum(jnp.exp(z), axis=-1, keepdims=True))   # (B, 1)
    col = jax.lax.broadcasted_iota(jnp.int32, logits.shape, 1)
    picked = jnp.sum(jnp.where(col == labels, z, 0.0), axis=-1, keepdims=True)
    ce = jnp.sum(lse - picked, axis=0, keepdims=True) / float(b)  # (1, 1)

    # Segment masks passed as an input (NOT captured constants).
    segs = segs_ref[...]                                          # (3, 80) f32
    seg3 = segs[0:1, :]
    seg5 = segs[1:2, :]
    seg8 = segs[2:3, :]

    # ------------------- ADE over the three horizons (one pass) --------------
    def ade_all(out_ref, y_ref, valid_ref):
        o = out_ref[...].astype(jnp.float32)                      # (N, 80, 2)
        y = y_ref[...].astype(jnp.float32)                        # (N, 80, 2)
        v = valid_ref[...].astype(jnp.float32)                    # (N, 80)  (pre-aligned)
        n = o.shape[0]

        d = y - o
        sq = jnp.sum(d * d, axis=-1)                              # (N, 80), T on lanes
        # PyTorch: loss[valid == 0] = 0 applied to the squared sum, THEN sqrt(+1e-8)
        sq = jnp.where(v == 0.0, 0.0, sq)
        dist = jnp.sqrt(sq + 1e-8)                                # (N, 80)

        def seg_sums(seg):
            return (jnp.sum(dist * seg, axis=-1, keepdims=True),   # (N, 1) numerator
                    jnp.sum(v * seg, axis=-1, keepdims=True))      # (N, 1) denominator
        n3, d3 = seg_sums(seg3)
        n5e, d5e = seg_sums(seg5)
        n8e, d8e = seg_sums(seg8)
        num5, den5 = n3 + n5e, d3 + d5e          # incremental prefix sums
        num8, den8 = num5 + n8e, den5 + d8e

        def horizon(num, den):
            row = num / (den + 1e-10)
            row = jnp.where(den == 0.0, 0.0, row)                  # no-valid rows -> 0
            # torch.mean over ALL rows (zeroed rows included)
            return jnp.sum(row, axis=0, keepdims=True) / float(n)  # (1, 1)

        l3 = horizon(n3, d3)
        l5 = horizon(num5, den5)
        l8 = horizon(num8, den8)
        lm = (l3 + l5 + l8) / 3.0
        return l3, l5, l8, lm

    a3, a5, a8, am = ade_all(out_a_ref, y_a_ref, valid_a_ref)
    b3, b5, b8, bm = ade_all(out_b_ref, y_b_ref, valid_b_ref)

    total = ce * 0.5 + (am + bm) * 0.5
    vals = (total, ce,
            a3, a5, a8, am,
            b3, b5, b8, bm,
            (a3 + b3) * 0.5, (a5 + b5) * 0.5, (a8 + b8) * 0.5, (am + bm) * 0.5)

    # Single lane-contiguous store of every scalar.
    lane = jax.lax.broadcasted_iota(jnp.int32, (1, _OUT_LANES), 1)
    res = jnp.zeros((1, _OUT_LANES), jnp.float32)
    for i, val in enumerate(vals):
        res = jnp.where(lane == i, val, res)
    res_ref[...] = res


def loss_forward(pred_class, relation, pred_a, y_a, valid_a, pred_b, y_b, valid_b):
    b, c = pred_class.shape
    labels = jnp.asarray(relation, jnp.int32).reshape(b, 1)
    segs = jnp.asarray(_SEGS)   # (3, PREDICT) f32 — kernel input, not a captured const

    # reshape-only glue (matches timestack_reshape; no-ops for already-shaped inputs)
    pred_a = pred_a.reshape(-1, PREDICT, 2)
    y_a = y_a.reshape(-1, PREDICT, 2)
    valid_a = valid_a.reshape(-1, TOTAL)[:, OBSERVED:]   # (N, 80) contiguous slice
    pred_b = pred_b.reshape(-1, PREDICT, 2)
    y_b = y_b.reshape(-1, PREDICT, 2)
    valid_b = valid_b.reshape(-1, TOTAL)[:, OBSERVED:]
    n = pred_a.shape[0]

    bytes_in = 4 * (b * c + b + 3 * PREDICT + 2 * (2 * n * PREDICT * 2 + n * PREDICT))
    cost = pl.CostEstimate(
        flops=int(10 * b * c + 2 * 30 * n * PREDICT),
        transcendentals=int(b * c + 2 * n * PREDICT),
        bytes_accessed=int(bytes_in + 4 * _OUT_LANES),
    )

    res = pl.pallas_call(
        _loss_kernel,
        out_shape=jax.ShapeDtypeStruct((1, _OUT_LANES), jnp.float32),
        in_specs=[_VMEM] * 9,
        out_specs=_VMEM,
        cost_estimate=cost,
    )(pred_class, labels, segs, pred_a, y_a, valid_a, pred_b, y_b, valid_b)

    vec = res[0]
    # TODO(synk): if production N grows large, shard a leading grid axis over
    # rows with dimension_semantics=("parallel",) and reduce partial sums.
    return {
        'Loss': vec[0],
        'CE': vec[1],
        'a_ADE': vec[2:6],
        'b_ADE': vec[6:10],
        'ADE': vec[10:14],
    }


if __name__ == "__main__":
    key = jax.random.PRNGKey(0)
    kc, kr, ka1, ka2, ka3, kb1, kb2, kb3 = jax.random.split(key, 8)

    B = 2              # batch (agent pairs)
    NUM_CLASSES = 4    # relation classes

    pred_class = jax.random.normal(kc, (B, NUM_CLASSES), dtype=jnp.float32)
    relation = jax.random.randint(kr, (B,), 0, NUM_CLASSES, dtype=jnp.int32)

    pred_a = jax.random.normal(ka1, (B, PREDICT, 2), dtype=jnp.float32)
    y_a = jax.random.normal(ka2, (B, PREDICT, 2), dtype=jnp.float32)
    valid_a = (jax.random.uniform(ka3, (B, TOTAL)) > 0.2).astype(jnp.float32)

    pred_b = jax.random.normal(kb1, (B, PREDICT, 2), dtype=jnp.float32)
    y_b = jax.random.normal(kb2, (B, PREDICT, 2), dtype=jnp.float32)
    valid_b = (jax.random.uniform(kb3, (B, TOTAL)) > 0.2).astype(jnp.float32)

    loss_fn = jax.jit(loss_forward)
    loss_dict = loss_fn(pred_class, relation,
                        pred_a, y_a, valid_a,
                        pred_b, y_b, valid_b)
    jax.tree_util.tree_map(jax.block_until_ready, loss_dict)
    print("KERNEL_OK")
</pallas_src>

<mosaic_0001>
module attributes {stable_mosaic.version = 11 : i64} {
  func.func @_loss_kernel(%arg0: memref<2x4xf32, #tpu.memory_space<vmem>>, %arg1: memref<2x1xi32, #tpu.memory_space<vmem>>, %arg2: memref<3x80xf32, #tpu.memory_space<vmem>>, %arg3: memref<2x80x2xf32, #tpu.memory_space<vmem>>, %arg4: memref<2x80x2xf32, #tpu.memory_space<vmem>>, %arg5: memref<2x80xf32, #tpu.memory_space<vmem>>, %arg6: memref<2x80x2xf32, #tpu.memory_space<vmem>>, %arg7: memref<2x80x2xf32, #tpu.memory_space<vmem>>, %arg8: memref<2x80xf32, #tpu.memory_space<vmem>>, %arg9: memref<1x16xf32, #tpu.memory_space<vmem>>) attributes {dimension_semantics = [], scalar_prefetch = 0 : i64, scratch_operands = 0 : i64, tpu.core_type = #tpu.core_type<tc>} {
    %c0 = arith.constant 0 : index
    %c0_0 = arith.constant 0 : index
    %0 = vector.load %arg0[%c0, %c0_0] : memref<2x4xf32, #tpu.memory_space<vmem>>, vector<2x4xf32>
    %c0_1 = arith.constant 0 : index
    %c0_2 = arith.constant 0 : index
    %1 = vector.load %arg1[%c0_1, %c0_2] : memref<2x1xi32, #tpu.memory_space<vmem>>, vector<2x1xi32>
    %cst = arith.constant dense<0xFF800000> : vector<2xf32>
    %2 = vector.multi_reduction <maximumf>, %0, %cst [1] : vector<2x4xf32> to vector<2xf32>
    %3 = vector.shape_cast %2 : vector<2xf32> to vector<2x1xf32>
    %4 = vector.broadcast %3 : vector<2x1xf32> to vector<2x4xf32>
    %5 = arith.subf %0, %4 : vector<2x4xf32>
    %6 = math.exp %5 : vector<2x4xf32>
    %cst_3 = arith.constant dense<0.000000e+00> : vector<2xf32>
    %7 = vector.multi_reduction <add>, %6, %cst_3 [1] : vector<2x4xf32> to vector<2xf32>
    %8 = vector.shape_cast %7 : vector<2xf32> to vector<2x1xf32>
    %9 = math.log %8 : vector<2x1xf32>
    %10 = tpu.iota {dimensions = array<i32: 1>} : vector<2x4xi32>
    %11 = vector.broadcast %1 : vector<2x1xi32> to vector<2x4xi32>
    %12 = arith.cmpi eq, %10, %11 : vector<2x4xi32>
    %cst_4 = arith.constant 0.000000e+00 : f32
    %13 = vector.broadcast %cst_4 : f32 to vector<2x4xf32>
    %14 = arith.select %12, %5, %13 : vector<2x4xi1>, vector<2x4xf32>
    %cst_5 = arith.constant dense<0.000000e+00> : vector<2xf32>
    %15 = vector.multi_reduction <add>, %14, %cst_5 [1] : vector<2x4xf32> to vector<2xf32>
    %16 = vector.shape_cast %15 : vector<2xf32> to vector<2x1xf32>
    %17 = arith.subf %9, %16 : vector<2x1xf32>
    %cst_6 = arith.constant dense<0.000000e+00> : vector<1xf32>
    %18 = vector.multi_reduction <add>, %17, %cst_6 [0] : vector<2x1xf32> to vector<1xf32>
    %19 = vector.shape_cast %18 : vector<1xf32> to vector<1x1xf32>
    %cst_7 = arith.constant 2.000000e+00 : f32
    %20 = vector.broadcast %cst_7 : f32 to vector<1x1xf32>
    %21 = arith.divf %19, %20 : vector<1x1xf32>
    %c0_8 = arith.constant 0 : index
    %c0_9 = arith.constant 0 : index
    %22 = vector.load %arg2[%c0_8, %c0_9] : memref<3x80xf32, #tpu.memory_space<vmem>>, vector<3x80xf32>
    %23 = vector.extract_strided_slice %22 {offsets = [0, 0], sizes = [1, 80], strides = [1, 1]} : vector<3x80xf32> to vector<1x80xf32>
    %24 = vector.extract_strided_slice %22 {offsets = [1, 0], sizes = [1, 80], strides = [1, 1]} : vector<3x80xf32> to vector<1x80xf32>
    %25 = vector.extract_strided_slice %22 {offsets = [2, 0], sizes = [1, 80], strides = [1, 1]} : vector<3x80xf32> to vector<1x80xf32>
    %c0_10 = arith.constant 0 : index
    %c0_11 = arith.constant 0 : index
    %c0_12 = arith.constant 0 : index
    %26 = vector.load %arg3[%c0_10, %c0_11, %c0_12] : memref<2x80x2xf32, #tpu.memory_space<vmem>>, vector<2x80x2xf32>
    %c0_13 = arith.constant 0 : index
    %c0_14 = arith.constant 0 : index
    %c0_15 = arith.constant 0 : index
    %27 = vector.load %arg4[%c0_13, %c0_14, %c0_15] : memref<2x80x2xf32, #tpu.memory_space<vmem>>, vector<2x80x2xf32>
    %c0_16 = arith.constant 0 : index
    %c0_17 = arith.constant 0 : index
    %28 = vector.load %arg5[%c0_16, %c0_17] : memref<2x80xf32, #tpu.memory_space<vmem>>, vector<2x80xf32>
    %29 = arith.subf %27, %26 : vector<2x80x2xf32>
    %30 = arith.mulf %29, %29 : vector<2x80x2xf32>
    %cst_18 = arith.constant dense<0.000000e+00> : vector<2x80xf32>
    %31 = vector.multi_reduction <add>, %30, %cst_18 [2] : vector<2x80x2xf32> to vector<2x80xf32>
    %cst_19 = arith.constant 0.000000e+00 : f32
    %32 = vector.broadcast %cst_19 : f32 to vector<2x80xf32>
    %33 = arith.cmpf oeq, %28, %32 : vector<2x80xf32>
    %cst_20 = arith.constant 0.000000e+00 : f32
    %34 = vector.broadcast %cst_20 : f32 to vector<2x80xf32>
    %35 = arith.select %33, %34, %31 : vector<2x80xi1>, vector<2x80xf32>
    %cst_21 = arith.constant 9.99999993E-9 : f32
    %36 = vector.broadcast %cst_21 : f32 to vector<2x80xf32>
    %37 = arith.addf %35, %36 : vector<2x80xf32>
    %38 = math.sqrt %37 : vector<2x80xf32>
    %39 = vector.broadcast %23 : vector<1x80xf32> to vector<2x80xf32>
    %40 = arith.mulf %38, %39 : vector<2x80xf32>
    %cst_22 = arith.constant dense<0.000000e+00> : vector<2xf32>
    %41 = vector.multi_reduction <add>, %40, %cst_22 [1] : vector<2x80xf32> to vector<2xf32>
    %42 = vector.shape_cast %41 : vector<2xf32> to vector<2x1xf32>
    %43 = vector.broadcast %23 : vector<1x80xf32> to vector<2x80xf32>
    %44 = arith.mulf %28, %43 : vector<2x80xf32>
    %cst_23 = arith.constant dense<0.000000e+00> : vector<2xf32>
    %45 = vector.multi_reduction <add>, %44, %cst_23 [1] : vector<2x80xf32> to vector<2xf32>
    %46 = vector.shape_cast %45 : vector<2xf32> to vector<2x1xf32>
    %47 = vector.broadcast %24 : vector<1x80xf32> to vector<2x80xf32>
    %48 = arith.mulf %38, %47 : vector<2x80xf32>
    %cst_24 = arith.constant dense<0.000000e+00> : vector<2xf32>
    %49 = vector.multi_reduction <add>, %48, %cst_24 [1] : vector<2x80xf32> to vector<2xf32>
    %50 = vector.shape_cast %49 : vector<2xf32> to vector<2x1xf32>
    %51 = vector.broadcast %24 : vector<1x80xf32> to vector<2x80xf32>
    %52 = arith.mulf %28, %51 : vector<2x80xf32>
    %cst_25 = arith.constant dense<0.000000e+00> : vector<2xf32>
    %53 = vector.multi_reduction <add>, %52, %cst_25 [1] : vector<2x80xf32> to vector<2xf32>
    %54 = vector.shape_cast %53 : vector<2xf32> to vector<2x1xf32>
    %55 = vector.broadcast %25 : vector<1x80xf32> to vector<2x80xf32>
    %56 = arith.mulf %38, %55 : vector<2x80xf32>
    %cst_26 = arith.constant dense<0.000000e+00> : vector<2xf32>
    %57 = vector.multi_reduction <add>, %56, %cst_26 [1] : vector<2x80xf32> to vector<2xf32>
    %58 = vector.shape_cast %57 : vector<2xf32> to vector<2x1xf32>
    %59 = vector.broadcast %25 : vector<1x80xf32> to vector<2x80xf32>
    %60 = arith.mulf %28, %59 : vector<2x80xf32>
    %cst_27 = arith.constant dense<0.000000e+00> : vector<2xf32>
    %61 = vector.multi_reduction <add>, %60, %cst_27 [1] : vector<2x80xf32> to vector<2xf32>
    %62 = vector.shape_cast %61 : vector<2xf32> to vector<2x1xf32>
    %63 = arith.addf %42, %50 : vector<2x1xf32>
    %64 = arith.addf %46, %54 : vector<2x1xf32>
    %65 = arith.addf %63, %58 : vector<2x1xf32>
    %66 = arith.addf %64, %62 : vector<2x1xf32>
    %cst_28 = arith.constant 1.000000e-10 : f32
    %67 = vector.broadcast %cst_28 : f32 to vector<2x1xf32>
    %68 = arith.addf %46, %67 : vector<2x1xf32>
    %69 = arith.divf %42, %68 : vector<2x1xf32>
    %cst_29 = arith.constant 0.000000e+00 : f32
    %70 = vector.broadcast %cst_29 : f32 to vector<2x1xf32>
    %71 = arith.cmpf oeq, %46, %70 : vector<2x1xf32>
    %cst_30 = arith.constant 0.000000e+00 : f32
    %72 = vector.broadcast %cst_30 : f32 to vector<2x1xf32>
    %73 = arith.select %71, %72, %69 : vector<2x1xi1>, vector<2x1xf32>
    %cst_31 = arith.constant dense<0.000000e+00> : vector<1xf32>
    %74 = vector.multi_reduction <add>, %73, %cst_31 [0] : vector<2x1xf32> to vector<1xf32>
    %75 = vector.shape_cast %74 : vector<1xf32> to vector<1x1xf32>
    %cst_32 = arith.constant 2.000000e+00 : f32
    %76 = vector.broadcast %cst_32 : f32 to vector<1x1xf32>
    %77 = arith.divf %75, %76 : vector<1x1xf32>
    %cst_33 = arith.constant 1.000000e-10 : f32
    %78 = vector.broadcast %cst_33 : f32 to vector<2x1xf32>
    %79 = arith.addf %64, %78 : vector<2x1xf32>
    %80 = arith.divf %63, %79 : vector<2x1xf32>
    %cst_34 = arith.constant 0.000000e+00 : f32
    %81 = vector.broadcast %cst_34 : f32 to vector<2x1xf32>
    %82 = arith.cmpf oeq, %64, %81 : vector<2x1xf32>
    %cst_35 = arith.constant 0.000000e+00 : f32
    %83 = vector.broadcast %cst_35 : f32 to vector<2x1xf32>
    %84 = arith.select %82, %83, %80 : vector<2x1xi1>, vector<2x1xf32>
    %cst_36 = arith.constant dense<0.000000e+00> : vector<1xf32>
    %85 = vector.multi_reduction <add>, %84, %cst_36 [0] : vector<2x1xf32> to vector<1xf32>
    %86 = vector.shape_cast %85 : vector<1xf32> to vector<1x1xf32>
    %cst_37 = arith.constant 2.000000e+00 : f32
    %87 = vector.broadcast %cst_37 : f32 to vector<1x1xf32>
    %88 = arith.divf %86, %87 : vector<1x1xf32>
    %cst_38 = arith.constant 1.000000e-10 : f32
    %89 = vector.broadcast %cst_38 : f32 to vector<2x1xf32>
    %90 = arith.addf %66, %89 : vector<2x1xf32>
    %91 = arith.divf %65, %90 : vector<2x1xf32>
    %cst_39 = arith.constant 0.000000e+00 : f32
    %92 = vector.broadcast %cst_39 : f32 to vector<2x1xf32>
    %93 = arith.cmpf oeq, %66, %92 : vector<2x1xf32>
    %cst_40 = arith.constant 0.000000e+00 : f32
    %94 = vector.broadcast %cst_40 : f32 to vector<2x1xf32>
    %95 = arith.select %93, %94, %91 : vector<2x1xi1>, vector<2x1xf32>
    %cst_41 = arith.constant dense<0.000000e+00> : vector<1xf32>
    %96 = vector.multi_reduction <add>, %95, %cst_41 [0] : vector<2x1xf32> to vector<1xf32>
    %97 = vector.shape_cast %96 : vector<1xf32> to vector<1x1xf32>
    %cst_42 = arith.constant 2.000000e+00 : f32
    %98 = vector.broadcast %cst_42 : f32 to vector<1x1xf32>
    %99 = arith.divf %97, %98 : vector<1x1xf32>
    %100 = arith.addf %77, %88 : vector<1x1xf32>
    %101 = arith.addf %100, %99 : vector<1x1xf32>
    %cst_43 = arith.constant 3.000000e+00 : f32
    %102 = vector.broadcast %cst_43 : f32 to vector<1x1xf32>
    %103 = arith.divf %101, %102 : vector<1x1xf32>
    %c0_44 = arith.constant 0 : index
    %c0_45 = arith.constant 0 : index
    %c0_46 = arith.constant 0 : index
    %104 = vector.load %arg6[%c0_44, %c0_45, %c0_46] : memref<2x80x2xf32, #tpu.memory_space<vmem>>, vector<2x80x2xf32>
    %c0_47 = arith.constant 0 : index
    %c0_48 = arith.constant 0 : index
    %c0_49 = arith.constant 0 : index
    %105 = vector.load %arg7[%c0_47, %c0_48, %c0_49] : memref<2x80x2xf32, #tpu.memory_space<vmem>>, vector<2x80x2xf32>
    %c0_50 = arith.constant 0 : index
    %c0_51 = arith.constant 0 : index
    %106 = vector.load %arg8[%c0_50, %c0_51] : memref<2x80xf32, #tpu.memory_space<vmem>>, vector<2x80xf32>
    %107 = arith.subf %105, %104 : vector<2x80x2xf32>
    %108 = arith.mulf %107, %107 : vector<2x80x2xf32>
    %cst_52 = arith.constant dense<0.000000e+00> : vector<2x80xf32>
    %109 = vector.multi_reduction <add>, %108, %cst_52 [2] : vector<2x80x2xf32> to vector<2x80xf32>
    %cst_53 = arith.constant 0.000000e+00 : f32
    %110 = vector.broadcast %cst_53 : f32 to vector<2x80xf32>
    %111 = arith.cmpf oeq, %106, %110 : vector<2x80xf32>
    %cst_54 = arith.constant 0.000000e+00 : f32
    %112 = vector.broadcast %cst_54 : f32 to vector<2x80xf32>
    %113 = arith.select %111, %112, %109 : vector<2x80xi1>, vector<2x80xf32>
    %cst_55 = arith.constant 9.99999993E-9 : f32
    %114 = vector.broadcast %cst_55 : f32 to vector<2x80xf32>
    %115 = arith.addf %113, %114 : vector<2x80xf32>
    %116 = math.sqrt %115 : vector<2x80xf32>
    %117 = vector.broadcast %23 : vector<1x80xf32> to vector<2x80xf32>
    %118 = arith.mulf %116, %117 : vector<2x80xf32>
    %cst_56 = arith.constant dense<0.000000e+00> : vector<2xf32>
    %119 = vector.multi_reduction <add>, %118, %cst_56 [1] : vector<2x80xf32> to vector<2xf32>
    %120 = vector.shape_cast %119 : vector<2xf32> to vector<2x1xf32>
    %121 = vector.broadcast %23 : vector<1x80xf32> to vector<2x80xf32>
    %122 = arith.mulf %106, %121 : vector<2x80xf32>
    %cst_57 = arith.constant dense<0.000000e+00> : vector<2xf32>
    %123 = vector.multi_reduction <add>, %122, %cst_57 [1] : vector<2x80xf32> to vector<2xf32>
    %124 = vector.shape_cast %123 : vector<2xf32> to vector<2x1xf32>
    %125 = vector.broadcast %24 : vector<1x80xf32> to vector<2x80xf32>
    %126 = arith.mulf %116, %125 : vector<2x80xf32>
    %cst_58 = arith.constant dense<0.000000e+00> : vector<2xf32>
    %127 = vector.multi_reduction <add>, %126, %cst_58 [1] : vector<2x80xf32> to vector<2xf32>
    %128 = vector.shape_cast %127 : vector<2xf32> to vector<2x1xf32>
    %129 = vector.broadcast %24 : vector<1x80xf32> to vector<2x80xf32>
    %130 = arith.mulf %106, %129 : vector<2x80xf32>
    %cst_59 = arith.constant dense<0.000000e+00> : vector<2xf32>
    %131 = vector.multi_reduction <add>, %130, %cst_59 [1] : vector<2x80xf32> to vector<2xf32>
    %132 = vector.shape_cast %131 : vector<2xf32> to vector<2x1xf32>
    %133 = vector.broadcast %25 : vector<1x80xf32> to vector<2x80xf32>
    %134 = arith.mulf %116, %133 : vector<2x80xf32>
    %cst_60 = arith.constant dense<0.000000e+00> : vector<2xf32>
    %135 = vector.multi_reduction <add>, %134, %cst_60 [1] : vector<2x80xf32> to vector<2xf32>
    %136 = vector.shape_cast %135 : vector<2xf32> to vector<2x1xf32>
    %137 = vector.broadcast %25 : vector<1x80xf32> to vector<2x80xf32>
    %138 = arith.mulf %106, %137 : vector<2x80xf32>
    %cst_61 = arith.constant dense<0.000000e+00> : vector<2xf32>
    %139 = vector.multi_reduction <add>, %138, %cst_61 [1] : vector<2x80xf32> to vector<2xf32>
    %140 = vector.shape_cast %139 : vector<2xf32> to vector<2x1xf32>
    %141 = arith.addf %120, %128 : vector<2x1xf32>
    %142 = arith.addf %124, %132 : vector<2x1xf32>
    %143 = arith.addf %141, %136 : vector<2x1xf32>
    %144 = arith.addf %142, %140 : vector<2x1xf32>
    %cst_62 = arith.constant 1.000000e-10 : f32
    %145 = vector.broadcast %cst_62 : f32 to vector<2x1xf32>
    %146 = arith.addf %124, %145 : vector<2x1xf32>
    %147 = arith.divf %120, %146 : vector<2x1xf32>
    %cst_63 = arith.constant 0.000000e+00 : f32
    %148 = vector.broadcast %cst_63 : f32 to vector<2x1xf32>
    %149 = arith.cmpf oeq, %124, %148 : vector<2x1xf32>
    %cst_64 = arith.constant 0.000000e+00 : f32
    %150 = vector.broadcast %cst_64 : f32 to vector<2x1xf32>
    %151 = arith.select %149, %150, %147 : vector<2x1xi1>, vector<2x1xf32>
    %cst_65 = arith.constant dense<0.000000e+00> : vector<1xf32>
    %152 = vector.multi_reduction <add>, %151, %cst_65 [0] : vector<2x1xf32> to vector<1xf32>
    %153 = vector.shape_cast %152 : vector<1xf32> to vector<1x1xf32>
    %cst_66 = arith.constant 2.000000e+00 : f32
    %154 = vector.broadcast %cst_66 : f32 to vector<1x1xf32>
    %155 = arith.divf %153, %154 : vector<1x1xf32>
    %cst_67 = arith.constant 1.000000e-10 : f32
    %156 = vector.broadcast %cst_67 : f32 to vector<2x1xf32>
    %157 = arith.addf %142, %156 : vector<2x1xf32>
    %158 = arith.divf %141, %157 : vector<2x1xf32>
    %cst_68 = arith.constant 0.000000e+00 : f32
    %159 = vector.broadcast %cst_68 : f32 to vector<2x1xf32>
    %160 = arith.cmpf oeq, %142, %159 : vector<2x1xf32>
    %cst_69 = arith.constant 0.000000e+00 : f32
    %161 = vector.broadcast %cst_69 : f32 to vector<2x1xf32>
    %162 = arith.select %160, %161, %158 : vector<2x1xi1>, vector<2x1xf32>
    %cst_70 = arith.constant dense<0.000000e+00> : vector<1xf32>
    %163 = vector.multi_reduction <add>, %162, %cst_70 [0] : vector<2x1xf32> to vector<1xf32>
    %164 = vector.shape_cast %163 : vector<1xf32> to vector<1x1xf32>
    %cst_71 = arith.constant 2.000000e+00 : f32
    %165 = vector.broadcast %cst_71 : f32 to vector<1x1xf32>
    %166 = arith.divf %164, %165 : vector<1x1xf32>
    %cst_72 = arith.constant 1.000000e-10 : f32
    %167 = vector.broadcast %cst_72 : f32 to vector<2x1xf32>
    %168 = arith.addf %144, %167 : vector<2x1xf32>
    %169 = arith.divf %143, %168 : vector<2x1xf32>
    %cst_73 = arith.constant 0.000000e+00 : f32
    %170 = vector.broadcast %cst_73 : f32 to vector<2x1xf32>
    %171 = arith.cmpf oeq, %144, %170 : vector<2x1xf32>
    %cst_74 = arith.constant 0.000000e+00 : f32
    %172 = vector.broadcast %cst_74 : f32 to vector<2x1xf32>
    %173 = arith.select %171, %172, %169 : vector<2x1xi1>, vector<2x1xf32>
    %cst_75 = arith.constant dense<0.000000e+00> : vector<1xf32>
    %174 = vector.multi_reduction <add>, %173, %cst_75 [0] : vector<2x1xf32> to vector<1xf32>
    %175 = vector.shape_cast %174 : vector<1xf32> to vector<1x1xf32>
    %cst_76 = arith.constant 2.000000e+00 : f32
    %176 = vector.broadcast %cst_76 : f32 to vector<1x1xf32>
    %177 = arith.divf %175, %176 : vector<1x1xf32>
    %178 = arith.addf %155, %166 : vector<1x1xf32>
    %179 = arith.addf %178, %177 : vector<1x1xf32>
    %cst_77 = arith.constant 3.000000e+00 : f32
    %180 = vector.broadcast %cst_77 : f32 to vector<1x1xf32>
    %181 = arith.divf %179, %180 : vector<1x1xf32>
    %cst_78 = arith.constant 5.000000e-01 : f32
    %182 = vector.broadcast %cst_78 : f32 to vector<1x1xf32>
    %183 = arith.mulf %21, %182 : vector<1x1xf32>
    %184 = arith.addf %103, %181 : vector<1x1xf32>
    %cst_79 = arith.constant 5.000000e-01 : f32
    %185 = vector.broadcast %cst_79 : f32 to vector<1x1xf32>
    %186 = arith.mulf %184, %185 : vector<1x1xf32>
    %187 = arith.addf %183, %186 : vector<1x1xf32>
    %188 = arith.addf %77, %155 : vector<1x1xf32>
    %cst_80 = arith.constant 5.000000e-01 : f32
    %189 = vector.broadcast %cst_80 : f32 to vector<1x1xf32>
    %190 = arith.mulf %188, %189 : vector<1x1xf32>
    %191 = arith.addf %88, %166 : vector<1x1xf32>
    %cst_81 = arith.constant 5.000000e-01 : f32
    %192 = vector.broadcast %cst_81 : f32 to vector<1x1xf32>
    %193 = arith.mulf %191, %192 : vector<1x1xf32>
    %194 = arith.addf %99, %177 : vector<1x1xf32>
    %cst_82 = arith.constant 5.000000e-01 : f32
    %195 = vector.broadcast %cst_82 : f32 to vector<1x1xf32>
    %196 = arith.mulf %194, %195 : vector<1x1xf32>
    %197 = arith.addf %103, %181 : vector<1x1xf32>
    %cst_83 = arith.constant 5.000000e-01 : f32
    %198 = vector.broadcast %cst_83 : f32 to vector<1x1xf32>
    %199 = arith.mulf %197, %198 : vector<1x1xf32>
    %200 = tpu.iota {dimensions = array<i32: 1>} : vector<1x16xi32>
    %cst_84 = arith.constant 0.000000e+00 : f32
    %201 = vector.broadcast %cst_84 : f32 to vector<1x16xf32>
    %c0_i32 = arith.constant 0 : i32
    %202 = vector.broadcast %c0_i32 : i32 to vector<1x16xi32>
    %203 = arith.cmpi eq, %200, %202 : vector<1x16xi32>
    %204 = vector.shape_cast %187 : vector<1x1xf32> to vector<1x1xf32>
    %205 = vector.broadcast %204 : vector<1x1xf32> to vector<1x16xf32>
    %206 = arith.select %203, %205, %201 : vector<1x16xi1>, vector<1x16xf32>
    %c1_i32 = arith.constant 1 : i32
    %207 = vector.broadcast %c1_i32 : i32 to vector<1x16xi32>
    %208 = arith.cmpi eq, %200, %207 : vector<1x16xi32>
    %209 = vector.shape_cast %21 : vector<1x1xf32> to vector<1x1xf32>
    %210 = vector.broadcast %209 : vector<1x1xf32> to vector<1x16xf32>
    %211 = arith.select %208, %210, %206 : vector<1x16xi1>, vector<1x16xf32>
    %c2_i32 = arith.constant 2 : i32
    %212 = vector.broadcast %c2_i32 : i32 to vector<1x16xi32>
    %213 = arith.cmpi eq, %200, %212 : vector<1x16xi32>
    %214 = vector.shape_cast %77 : vector<1x1xf32> to vector<1x1xf32>
    %215 = vector.broadcast %214 : vector<1x1xf32> to vector<1x16xf32>
    %216 = arith.select %213, %215, %211 : vector<1x16xi1>, vector<1x16xf32>
    %c3_i32 = arith.constant 3 : i32
    %217 = vector.broadcast %c3_i32 : i32 to vector<1x16xi32>
    %218 = arith.cmpi eq, %200, %217 : vector<1x16xi32>
    %219 = vector.shape_cast %88 : vector<1x1xf32> to vector<1x1xf32>
    %220 = vector.broadcast %219 : vector<1x1xf32> to vector<1x16xf32>
    %221 = arith.select %218, %220, %216 : vector<1x16xi1>, vector<1x16xf32>
    %c4_i32 = arith.constant 4 : i32
    %222 = vector.broadcast %c4_i32 : i32 to vector<1x16xi32>
    %223 = arith.cmpi eq, %200, %222 : vector<1x16xi32>
    %224 = vector.shape_cast %99 : vector<1x1xf32> to vector<1x1xf32>
    %225 = vector.broadcast %224 : vector<1x1xf32> to vector<1x16xf32>
    %226 = arith.select %223, %225, %221 : vector<1x16xi1>, vector<1x16xf32>
    %c5_i32 = arith.constant 5 : i32
    %227 = vector.broadcast %c5_i32 : i32 to vector<1x16xi32>
    %228 = arith.cmpi eq, %200, %227 : vector<1x16xi32>
    %229 = vector.shape_cast %103 : vector<1x1xf32> to vector<1x1xf32>
    %230 = vector.broadcast %229 : vector<1x1xf32> to vector<1x16xf32>
    %231 = arith.select %228, %230, %226 : vector<1x16xi1>, vector<1x16xf32>
    %c6_i32 = arith.constant 6 : i32
    %232 = vector.broadcast %c6_i32 : i32 to vector<1x16xi32>
    %233 = arith.cmpi eq, %200, %232 : vector<1x16xi32>
    %234 = vector.shape_cast %155 : vector<1x1xf32> to vector<1x1xf32>
    %235 = vector.broadcast %234 : vector<1x1xf32> to vector<1x16xf32>
    %236 = arith.select %233, %235, %231 : vector<1x16xi1>, vector<1x16xf32>
    %c7_i32 = arith.constant 7 : i32
    %237 = vector.broadcast %c7_i32 : i32 to vector<1x16xi32>
    %238 = arith.cmpi eq, %200, %237 : vector<1x16xi32>
    %239 = vector.shape_cast %166 : vector<1x1xf32> to vector<1x1xf32>
    %240 = vector.broadcast %239 : vector<1x1xf32> to vector<1x16xf32>
    %241 = arith.select %238, %240, %236 : vector<1x16xi1>, vector<1x16xf32>
    %c8_i32 = arith.constant 8 : i32
    %242 = vector.broadcast %c8_i32 : i32 to vector<1x16xi32>
    %243 = arith.cmpi eq, %200, %242 : vector<1x16xi32>
    %244 = vector.shape_cast %177 : vector<1x1xf32> to vector<1x1xf32>
    %245 = vector.broadcast %244 : vector<1x1xf32> to vector<1x16xf32>
    %246 = arith.select %243, %245, %241 : vector<1x16xi1>, vector<1x16xf32>
    %c9_i32 = arith.constant 9 : i32
    %247 = vector.broadcast %c9_i32 : i32 to vector<1x16xi32>
    %248 = arith.cmpi eq, %200, %247 : vector<1x16xi32>
    %249 = vector.shape_cast %181 : vector<1x1xf32> to vector<1x1xf32>
    %250 = vector.broadcast %249 : vector<1x1xf32> to vector<1x16xf32>
    %251 = arith.select %248, %250, %246 : vector<1x16xi1>, vector<1x16xf32>
    %c10_i32 = arith.constant 10 : i32
    %252 = vector.broadcast %c10_i32 : i32 to vector<1x16xi32>
    %253 = arith.cmpi eq, %200, %252 : vector<1x16xi32>
    %254 = vector.shape_cast %190 : vector<1x1xf32> to vector<1x1xf32>
    %255 = vector.broadcast %254 : vector<1x1xf32> to vector<1x16xf32>
    %256 = arith.select %253, %255, %251 : vector<1x16xi1>, vector<1x16xf32>
    %c11_i32 = arith.constant 11 : i32
    %257 = vector.broadcast %c11_i32 : i32 to vector<1x16xi32>
    %258 = arith.cmpi eq, %200, %257 : vector<1x16xi32>
    %259 = vector.shape_cast %193 : vector<1x1xf32> to vector<1x1xf32>
    %260 = vector.broadcast %259 : vector<1x1xf32> to vector<1x16xf32>
    %261 = arith.select %258, %260, %256 : vector<1x16xi1>, vector<1x16xf32>
    %c12_i32 = arith.constant 12 : i32
    %262 = vector.broadcast %c12_i32 : i32 to vector<1x16xi32>
    %263 = arith.cmpi eq, %200, %262 : vector<1x16xi32>
    %264 = vector.shape_cast %196 : vector<1x1xf32> to vector<1x1xf32>
    %265 = vector.broadcast %264 : vector<1x1xf32> to vector<1x16xf32>
    %266 = arith.select %263, %265, %261 : vector<1x16xi1>, vector<1x16xf32>
    %c13_i32 = arith.constant 13 : i32
    %267 = vector.broadcast %c13_i32 : i32 to vector<1x16xi32>
    %268 = arith.cmpi eq, %200, %267 : vector<1x16xi32>
    %269 = vector.shape_cast %199 : vector<1x1xf32> to vector<1x1xf32>
    %270 = vector.broadcast %269 : vector<1x1xf32> to vector<1x16xf32>
    %271 = arith.select %268, %270, %266 : vector<1x16xi1>, vector<1x16xf32>
    %c0_85 = arith.constant 0 : index
    %c0_86 = arith.constant 0 : index
    %272 = vector.load %arg9[%c0_85, %c0_86] : memref<1x16xf32, #tpu.memory_space<vmem>>, vector<1x16xf32>
    tpu.vector_store %arg9[%c0_85, %c0_86], %271 {strides = array<i32>} : memref<1x16xf32, #tpu.memory_space<vmem>>, vector<1x16xf32>,
    return
  }
}

</mosaic_0001>

<llo_original>
// kernel: loss_forward.1
$region0: #{loss_forward.1}
  #allocation0 [shape = 'u32[]', space=smem, size = 0x4, offset = 0x4, fixed_abs, tag = 'smem constant byte address 0x4 - core index']
  #allocation1 [shape = 'u32[144,128]{1,0:T(1,128)}', space=vmem, size = 0x12000, scoped, tag = 'internal scratch']
  %s0 = inlined_call_operand.vmem [shape: f32[2,4], index: 0, kind: input, shape index: {}]
  %s1 = inlined_call_operand.vmem [shape: s32[2,1], index: 1, kind: input, shape index: {}]
  %s2 = inlined_call_operand.vmem [shape: f32[3,80], index: 2, kind: input, shape index: {}]
  %s3 = inlined_call_operand.vmem [shape: f32[2,80,2], index: 3, kind: input, shape index: {}]
  %s4 = inlined_call_operand.vmem [shape: f32[2,80,2], index: 4, kind: input, shape index: {}]
  %s5 = inlined_call_operand.vmem [shape: f32[2,80], index: 5, kind: input, shape index: {}]
  %s6 = inlined_call_operand.vmem [shape: f32[2,80,2], index: 6, kind: input, shape index: {}]
  %s7 = inlined_call_operand.vmem [shape: f32[2,80,2], index: 7, kind: input, shape index: {}]
  %s8 = inlined_call_operand.vmem [shape: f32[2,80], index: 8, kind: input, shape index: {}]
  %s9 = inlined_call_operand.vmem [shape: f32[1,16], index: 9, kind: output, shape index: {}]
  %s10 = sld [smem:[#allocation0]]
  $region46: #{loss_forward.1} parent=0
    _
  %s12 = ssub.s32 1, %s10
  %s13 = scalar_select 0, %s12, %s10
  // Predicated region
  $region2: #{loss_forward.1} parent=0 // pred_check
    _
  $region3: #{loss_forward.1} parent=0 // pred_check_branch
    %15 = sbr.rel (0) target = $region5
  $region4: #{loss_forward.1} parent=0 // pred_region
    _
  $region5: #{loss_forward.1} parent=0 // pred_fallthru
    _
  // Predicated region
  $region6: #{loss_forward.1} parent=0 // pred_check
    _
  $region7: #{loss_forward.1} parent=0 // pred_check_branch
    %17 = sbr.rel (0) target = $region9
  $region8: #{loss_forward.1} parent=0 // pred_region
    _
  $region9: #{loss_forward.1} parent=0 // pred_fallthru
    _
  // Predicated region
  $region10: #{loss_forward.1} parent=0 // pred_check
    _
  $region11: #{loss_forward.1} parent=0 // pred_check_branch
    %19 = sbr.rel (0) target = $region13
  $region12: #{loss_forward.1} parent=0 // pred_region
    _
  $region13: #{loss_forward.1} parent=0 // pred_fallthru
    _
  // Predicated region
  $region14: #{loss_forward.1} parent=0 // pred_check
    _
  $region15: #{loss_forward.1} parent=0 // pred_check_branch
    %21 = sbr.rel (0) target = $region17
  $region16: #{loss_forward.1} parent=0 // pred_region
    _
  $region17: #{loss_forward.1} parent=0 // pred_fallthru
    _
  // Predicated region
  $region18: #{loss_forward.1} parent=0 // pred_check
    _
  $region19: #{loss_forward.1} parent=0 // pred_check_branch
    %23 = sbr.rel (0) target = $region21
  $region20: #{loss_forward.1} parent=0 // pred_region
    _
  $region21: #{loss_forward.1} parent=0 // pred_fallthru
    _
  // Predicated region
  $region22: #{loss_forward.1} parent=0 // pred_check
    _
  $region23: #{loss_forward.1} parent=0 // pred_check_branch
    %25 = sbr.rel (0) target = $region25
  $region24: #{loss_forward.1} parent=0 // pred_region
    _
  $region25: #{loss_forward.1} parent=0 // pred_fallthru
    _
  // Predicated region
  $region26: #{loss_forward.1} parent=0 // pred_check
    _
  $region27: #{loss_forward.1} parent=0 // pred_check_branch
    %27 = sbr.rel (0) target = $region29
  $region28: #{loss_forward.1} parent=0 // pred_region
    _
  $region29: #{loss_forward.1} parent=0 // pred_fallthru
    _
  // Predicated region
  $region30: #{loss_forward.1} parent=0 // pred_check
    _
  $region31: #{loss_forward.1} parent=0 // pred_check_branch
    %29 = sbr.rel (0) target = $region33
  $region32: #{loss_forward.1} parent=0 // pred_region
    _
  $region33: #{loss_forward.1} parent=0 // pred_fallthru
    _
  // Predicated region
  $region34: #{loss_forward.1} parent=0 // pred_check
    _
  $region35: #{loss_forward.1} parent=0 // pred_check_branch
    %31 = sbr.rel (0) target = $region37
  $region36: #{loss_forward.1} parent=0 // pred_region
    _
  $region37: #{loss_forward.1} parent=0 // pred_fallthru
    _
  %v32 = vld [vmem:[%s0] sm:$0x3]
  %v33 = vld [vmem:[%s1] sm:$0x3]
  %vm34 = vcmask 25600
  %v35 = vsel %vm34, %v32, -inf
  %36 = vmax.xlane.f32.xlu0 %v35
  %v37 = vpop.xlane.xlu0 %36
  %v38 = vsub.f32 %v32, %v37
  %v39 = vmul.f32 %v38, 1.442695
  %v40 = vpow.pop %v39
  %v41 = vsel %vm34, %v40, 0.0
  %42 = vadd.xlane.f32.xlu0 %v41
  %v43 = vpop.xlane.xlu0 %42
  %v44 = vlog2.pop %v43
  %v45 = vmul.f32 %v44, 0.6931472
  %v46 = vlaneseq
  %v47 = vand.u32 %v46, 127
  %48 = vset.pattern.permute.xlu0 0
  %49 = vperm.xlu0 %48, %v33
  %v50 = vpop.permute.xlu0 %49
  %vm51 = vcmp.eq.s32.totalorder %v47, %v50
  %v52 = vsel %vm51, %v38, 0.0
  %v53 = vsel %vm34, %v52, 0.0
  %54 = vadd.xlane.f32.xlu0 %v53
  %v55 = vpop.xlane.xlu0 %54
  %v56 = vsub.f32 %v45, %v55
  %vm57 = vcmask 1041408
  %v58 = vsel %vm57, %v56, 0.0
  %v59 = vrot.slane %v58, 4
  %v60 = vadd.f32 %v58, %v59
  %v61 = vrot.slane %v60, 2
  %v62 = vadd.f32 %v60, %v61
  %v63 = vrot.slane %v62, 1
  %v64 = vadd.f32 %v62, %v63
  %v65 = vrcp.pop 2.0
  %v66 = vmul.f32 %v64, %v65
  %v67 = vld [vmem:[%s2] sm:$0x7]
  %v68 = vld [vmem:[%s3] sm:$0xff]
  %v69 = vld [vmem:[%s3 + $0x8] sm:$0xff]
  %v70 = vld [vmem:[%s3 + $0x10] sm:$0xff]
  %v71 = vld [vmem:[%s3 + $0x18] sm:$0xff]
  %v72 = vld [vmem:[%s3 + $0x20] sm:$0xff]
  %v73 = vld [vmem:[%s3 + $0x28] sm:$0xff]
  %v74 = vld [vmem:[%s3 + $0x30] sm:$0xff]
  %v75 = vld [vmem:[%s3 + $0x38] sm:$0xff]
  %v76 = vld [vmem:[%s3 + $0x40] sm:$0xff]
  %v77 = vld [vmem:[%s3 + $0x48] sm:$0xff]
  %v78 = vld [vmem:[%s3 + $0x50] sm:$0xff]
  %v79 = vld [vmem:[%s3 + $0x58] sm:$0xff]
  %v80 = vld [vmem:[%s3 + $0x60] sm:$0xff]
  %v81 = vld [vmem:[%s3 + $0x68] sm:$0xff]
  %v82 = vld [vmem:[%s3 + $0x70] sm:$0xff]
  %v83 = vld [vmem:[%s3 + $0x78] sm:$0xff]
  %v84 = vld [vmem:[%s3 + $0x80] sm:$0xff]
  %v85 = vld [vmem:[%s3 + $0x88] sm:$0xff]
  %v86 = vld [vmem:[%s3 + $0x90] sm:$0xff]
  %v87 = vld [vmem:[%s3 + $0x98] sm:$0xff]
  %v88 = vld [vmem:[%s4] sm:$0xff]
  %v89 = vld [vmem:[%s4 + $0x8] sm:$0xff]
  %v90 = vld [vmem:[%s4 + $0x10] sm:$0xff]
  %v91 = vld [vmem:[%s4 + $0x18] sm:$0xff]
  %v92 = vld [vmem:[%s4 + $0x20] sm:$0xff]
  %v93 = vld [vmem:[%s4 + $0x28] sm:$0xff]
  %v94 = vld [vmem:[%s4 + $0x30] sm:$0xff]
  %v95 = vld [vmem:[%s4 + $0x38] sm:$0xff]
  %v96 = vld [vmem:[%s4 + $0x40] sm:$0xff]
  %v97 = vld [vmem:[%s4 + $0x48] sm:$0xff]
  %v98 = vld [vmem:[%s4 + $0x50] sm:$0xff]
  %v99 = vld [vmem:[%s4 + $0x58] sm:$0xff]
  %v100 = vld [vmem:[%s4 + $0x60] sm:$0xff]
  %v101 = vld [vmem:[%s4 + $0x68] sm:$0xff]
  %v102 = vld [vmem:[%s4 + $0x70] sm:$0xff]
  %v103 = vld [vmem:[%s4 + $0x78] sm:$0xff]
  %v104 = vld [vmem:[%s4 + $0x80] sm:$0xff]
  %v105 = vld [vmem:[%s4 + $0x88] sm:$0xff]
  %v106 = vld [vmem:[%s4 + $0x90] sm:$0xff]
  %v107 = vld [vmem:[%s4 + $0x98] sm:$0xff]
  %v108 = vld [vmem:[%s5] sm:$0x3]
  %v109 = vsub.f32 %v88, %v68
  %v110 = vsub.f32 %v89, %v69
  %v111 = vsub.f32 %v90, %v70
  %v112 = vsub.f32 %v91, %v71
  %v113 = vsub.f32 %v92, %v72
  %v114 = vsub.f32 %v93, %v73
  %v115 = vsub.f32 %v94, %v74
  %v116 = vsub.f32 %v95, %v75
  %v117 = vsub.f32 %v96, %v76
  %v118 = vsub.f32 %v97, %v77
  %v119 = vsub.f32 %v98, %v78
  %v120 = vsub.f32 %v99, %v79
  %v121 = vsub.f32 %v100, %v80
  %v122 = vsub.f32 %v101, %v81
  %v123 = vsub.f32 %v102, %v82
  %v124 = vsub.f32 %v103, %v83
  %v125 = vsub.f32 %v104, %v84
  %v126 = vsub.f32 %v105, %v85
  %v127 = vsub.f32 %v106, %v86
  %v128 = vsub.f32 %v107, %v87
  %v129 = vmul.f32 %v109, %v109
  %v130 = vmul.f32 %v110, %v110
  %v131 = vmul.f32 %v111, %v111
  %v132 = vmul.f32 %v112, %v112
  %v133 = vmul.f32 %v113, %v113
  %v134 = vmul.f32 %v114, %v114
  %v135 = vmul.f32 %v115, %v115
  %v136 = vmul.f32 %v116, %v116
  %v137 = vmul.f32 %v117, %v117
  %v138 = vmul.f32 %v118, %v118
  %v139 = vmul.f32 %v119, %v119
  %v140 = vmul.f32 %v120, %v120
  %v141 = vmul.f32 %v121, %v121
  %v142 = vmul.f32 %v122, %v122
  %v143 = vmul.f32 %v123, %v123
  %v144 = vmul.f32 %v124, %v124
  %v145 = vmul.f32 %v125, %v125
  %v146 = vmul.f32 %v126, %v126
  %v147 = vmul.f32 %v127, %v127
  %v148 = vmul.f32 %v128, %v128
  %vm149 = vcmask 15360
  %v150 = vsel %vm149, %v129, 0.0
  %151 = vadd.xlane.f32.xlu0 %v150
  %v152 = vpop.xlane.xlu0 %151
  %v153 = vsel %vm149, %v130, 0.0
  %154 = vadd.xlane.f32.xlu0 %v153
  %v155 = vpop.xlane.xlu0 %154
  %v156 = vsel %vm149, %v131, 0.0
  %157 = vadd.xlane.f32.xlu0 %v156
  %v158 = vpop.xlane.xlu0 %157
  %v159 = vsel %vm149, %v132, 0.0
  %160 = vadd.xlane.f32.xlu0 %v159
  %v161 = vpop.xlane.xlu0 %160
  %v162 = vsel %vm149, %v133, 0.0
  %163 = vadd.xlane.f32.xlu0 %v162
  %v164 = vpop.xlane.xlu0 %163
  %v165 = vsel %vm149, %v134, 0.0
  %166 = vadd.xlane.f32.xlu0 %v165
  %v167 = vpop.xlane.xlu0 %166
  %v168 = vsel %vm149, %v135, 0.0
  %169 = vadd.xlane.f32.xlu0 %v168
  %v170 = vpop.xlane.xlu0 %169
  %v171 = vsel %vm149, %v136, 0.0
  %172 = vadd.xlane.f32.xlu0 %v171
  %v173 = vpop.xlane.xlu0 %172
  %v174 = vsel %vm149, %v137, 0.0
  %175 = vadd.xlane.f32.xlu0 %v174
  %v176 = vpop.xlane.xlu0 %175
  %v177 = vsel %vm149, %v138, 0.0
  %178 = vadd.xlane.f32.xlu0 %v177
  %v179 = vpop.xlane.xlu0 %178
  %v180 = vsel %vm149, %v139, 0.0
  %181 = vadd.xlane.f32.xlu0 %v180
  %v182 = vpop.xlane.xlu0 %181
  %v183 = vsel %vm149, %v140, 0.0
  %184 = vadd.xlane.f32.xlu0 %v183
  %v185 = vpop.xlane.xlu0 %184
  %v186 = vsel %vm149, %v141, 0.0
  %187 = vadd.xlane.f32.xlu0 %v186
  %v188 = vpop.xlane.xlu0 %187
  %v189 = vsel %vm149, %v142, 0.0
  %190 = vadd.xlane.f32.xlu0 %v189
  %v191 = vpop.xlane.xlu0 %190
  %v192 = vsel %vm149, %v143, 0.0
  %193 = vadd.xlane.f32.xlu0 %v192
  %v194 = vpop.xlane.xlu0 %193
  %v195 = vsel %vm149, %v144, 0.0
  %196 = vadd.xlane.f32.xlu0 %v195
  %v197 = vpop.xlane.xlu0 %196
  %v198 = vsel %vm149, %v145, 0.0
  %199 = vadd.xlane.f32.xlu0 %v198
  %v200 = vpop.xlane.xlu0 %199
  %v201 = vsel %vm149, %v146, 0.0
  %202 = vadd.xlane.f32.xlu0 %v201
  %v203 = vpop.xlane.xlu0 %202
  %v204 = vsel %vm149, %v147, 0.0
  %205 = vadd.xlane.f32.xlu0 %v204
  %v206 = vpop.xlane.xlu0 %205
  %v207 = vsel %vm149, %v148, 0.0
  %208 = vadd.xlane.f32.xlu0 %v207
  %v209 = vpop.xlane.xlu0 %208
  %vm210 = vcmp.eq.f32.partialorder %v108, 0.0
  %v231 = vlaneseq
  %v232 = vshrl.u32 %v231, 7
  %v233 = vsub.s32 %v47, %v232
  %v234 = vrot.slane %v152, %v233
  %v235 = vadd.s32 %v47, 4294967288
  %v236 = vlaneseq
  %v237 = vshrl.u32 %v236, 7
  %v238 = vsub.s32 %v235, %v237
  %v239 = vrot.slane %v155, %v238
  %vm240 = vcmask 130112
  %v241 = vsel %vm240, %v239, %v234
  %v242 = vadd.s32 %v47, 4294967280
  %v243 = vlaneseq
  %v244 = vshrl.u32 %v243, 7
  %v245 = vsub.s32 %v242, %v244
  %v246 = vrot.slane %v158, %v245
  %vm247 = vcmask 195712
  %v248 = vsel %vm247, %v246, %v241
  %v249 = vadd.s32 %v47, 4294967272
  %v250 = vlaneseq
  %v251 = vshrl.u32 %v250, 7
  %v252 = vsub.s32 %v249, %v251
  %v253 = vrot.slane %v161, %v252
  %vm254 = vcmask 261312
  %v255 = vsel %vm254, %v253, %v248
  %v256 = vadd.s32 %v47, 4294967264
  %v257 = vlaneseq
  %v258 = vshrl.u32 %v257, 7
  %v259 = vsub.s32 %v256, %v258
  %v260 = vrot.slane %v164, %v259
  %vm261 = vcmask 326912
  %v262 = vsel %vm261, %v260, %v255
  %v263 = vadd.s32 %v47, 4294967256
  %v264 = vlaneseq
  %v265 = vshrl.u32 %v264, 7
  %v266 = vsub.s32 %v263, %v265
  %v267 = vrot.slane %v167, %v266
  %vm268 = vcmask 392512
  %v269 = vsel %vm268, %v267, %v262
  %v270 = vadd.s32 %v47, 4294967248
  %v271 = vlaneseq
  %v272 = vshrl.u32 %v271, 7
  %v273 = vsub.s32 %v270, %v272
  %v274 = vrot.slane %v170, %v273
  %vm275 = vcmask 458112
  %v276 = vsel %vm275, %v274, %v269
  %v277 = vadd.s32 %v47, 4294967240
  %v278 = vlaneseq
  %v279 = vshrl.u32 %v278, 7
  %v280 = vsub.s32 %v277, %v279
  %v281 = vrot.slane %v173, %v280
  %vm282 = vcmask 523712
  %v283 = vsel %vm282, %v281, %v276
  %v284 = vadd.s32 %v47, 4294967232
  %v285 = vlaneseq
  %v286 = vshrl.u32 %v285, 7
  %v287 = vsub.s32 %v284, %v286
  %v288 = vrot.slane %v176, %v287
  %vm289 = vcmask 589312
  %v290 = vsel %vm289, %v288, %v283
  %v291 = vadd.s32 %v47, 4294967224
  %v292 = vlaneseq
  %v293 = vshrl.u32 %v292, 7
  %v294 = vsub.s32 %v291, %v293
  %v295 = vrot.slane %v179, %v294
  %vm296 = vcmask 654912
  %v297 = vsel %vm296, %v295, %v290
  %v298 = vlaneseq
  %v299 = vshrl.u32 %v298, 7
  %v300 = vsub.s32 %v47, %v299
  %v301 = vrot.slane %v182, %v300
  %v302 = vlaneseq
  %v303 = vshrl.u32 %v302, 7
  %v304 = vsub.s32 %v235, %v303
  %v305 = vrot.slane %v185, %v304
  %v306 = vsel %vm240, %v305, %v301
  %v307 = vlaneseq
  %v308 = vshrl.u32 %v307, 7
  %v309 = vsub.s32 %v242, %v308
  %v310 = vrot.slane %v188, %v309
  %v311 = vsel %vm247, %v310, %v306
  %v312 = vlaneseq
  %v313 = vshrl.u32 %v312, 7
  %v314 = vsub.s32 %v249, %v313
  %v315 = vrot.slane %v191, %v314
  %v316 = vsel %vm254, %v315, %v311
  %v317 = vlaneseq
  %v318 = vshrl.u32 %v317, 7
  %v319 = vsub.s32 %v256, %v318
  %v320 = vrot.slane %v194, %v319
  %v321 = vsel %vm261, %v320, %v316
  %v322 = vlaneseq
  %v323 = vshrl.u32 %v322, 7
  %v324 = vsub.s32 %v263, %v323
  %v325 = vrot.slane %v197, %v324
  %v326 = vsel %vm268, %v325, %v321
  %v327 = vlaneseq
  %v328 = vshrl.u32 %v327, 7
  %v329 = vsub.s32 %v270, %v328
  %v330 = vrot.slane %v200, %v329
  %v331 = vsel %vm275, %v330, %v326
  %v332 = vlaneseq
  %v333 = vshrl.u32 %v332, 7
  %v334 = vsub.s32 %v277, %v333
  %v335 = vrot.slane %v203, %v334
  %v336 = vsel %vm282, %v335, %v331
  %v337 = vlaneseq
  %v338 = vshrl.u32 %v337, 7
  %v339 = vsub.s32 %v284, %v338
  %v340 = vrot.slane %v206, %v339
  %v341 = vsel %vm289, %v340, %v336
  %v342 = vlaneseq
  %v343 = vshrl.u32 %v342, 7
  %v344 = vsub.s32 %v291, %v343
  %v345 = vrot.slane %v209, %v344
  %v346 = vsel %vm296, %v345, %v341
  %vm347 = vcmask 1041409
  %v348 = vsel %vm347, %v346, %v297
  %v350 = vsel %vm210, 0.0, %v348
  %v351 = vadd.f32 %v350, 1e-08
  %v352 = vrsqrt.pop %v351
  %v353 = vmul.f32 %v351, %v352
  %vm354 = vcmp.eq.f32.partialorder %v351, inf
  %v355 = vsel %vm354, %v351, %v353
  %vm356 = vcmp.eq.f32.partialorder %v351, 0.0
  %v357 = vand.u32 %v351, 2147483648
  %v358 = vsel %vm356, %v357, %v355
  %v359 = vlaneseq
  %v360 = vshrl.u32 %v359, 7
  %v361 = vsub.s32 0, %v360
  %v362 = vrot.slane %v67, %v361
  %v363 = vmul.f32 %v358, %v362
  %vm364 = vcmask 648192
  %v365 = vsel %vm364, %v363, 0.0
  %366 = vadd.xlane.f32.xlu0 %v365
  %v367 = vpop.xlane.xlu0 %366
  %v368 = vmul.f32 %v108, %v362
  %v369 = vsel %vm364, %v368, 0.0
  %370 = vadd.xlane.f32.xlu0 %v369
  %v371 = vpop.xlane.xlu0 %370
  %v372 = vlaneseq
  %v373 = vshrl.u32 %v372, 7
  %v374 = vsub.s32 1, %v373
  %v375 = vrot.slane %v67, %v374
  %v376 = vmul.f32 %v358, %v375
  %v377 = vsel %vm364, %v376, 0.0
  %378 = vadd.xlane.f32.xlu0 %v377
  %v379 = vpop.xlane.xlu0 %378
  %v380 = vmul.f32 %v108, %v375
  %v381 = vsel %vm364, %v380, 0.0
  %382 = vadd.xlane.f32.xlu0 %v381
  %v383 = vpop.xlane.xlu0 %382
  %v384 = vlaneseq
  %v385 = vshrl.u32 %v384, 7
  %v386 = vsub.s32 2, %v385
  %v387 = vrot.slane %v67, %v386
  %v388 = vmul.f32 %v358, %v387
  %v389 = vsel %vm364, %v388, 0.0
  %390 = vadd.xlane.f32.xlu0 %v389
  %v391 = vpop.xlane.xlu0 %390
  %v392 = vmul.f32 %v108, %v387
  %v393 = vsel %vm364, %v392, 0.0
  %394 = vadd.xlane.f32.xlu0 %v393
  %v395 = vpop.xlane.xlu0 %394
  %v396 = vadd.f32 %v367, %v379
  %v397 = vadd.f32 %v371, %v383
  %v398 = vadd.f32 %v396, %v391
  %v399 = vadd.f32 %v397, %v395
  %v400 = vadd.f32 %v371, 1e-10
  %v401 = vrcp.pop %v400
  %v402 = vmul.f32 %v367, %v401
  %vm403 = vcmp.eq.f32.partialorder %v371, 0.0
  %v404 = vsel %vm403, 0.0, %v402
  %v405 = vsel %vm57, %v404, 0.0
  %v406 = vrot.slane %v405, 4
  %v407 = vadd.f32 %v405, %v406
  %v408 = vrot.slane %v407, 2
  %v409 = vadd.f32 %v407, %v408
  %v410 = vrot.slane %v409, 1
  %v411 = vadd.f32 %v409, %v410
  %v412 = vmul.f32 %v411, %v65
  %v413 = vadd.f32 %v397, 1e-10
  %v414 = vrcp.pop %v413
  %v415 = vmul.f32 %v396, %v414
  %vm416 = vcmp.eq.f32.partialorder %v397, 0.0
  %v417 = vsel %vm416, 0.0, %v415
  %v418 = vsel %vm57, %v417, 0.0
  %v419 = vrot.slane %v418, 4
  %v420 = vadd.f32 %v418, %v419
  %v421 = vrot.slane %v420, 2
  %v422 = vadd.f32 %v420, %v421
  %v423 = vrot.slane %v422, 1
  %v424 = vadd.f32 %v422, %v423
  %v425 = vmul.f32 %v424, %v65
  %v426 = vadd.f32 %v399, 1e-10
  %v427 = vrcp.pop %v426
  %v428 = vmul.f32 %v398, %v427
  %vm429 = vcmp.eq.f32.partialorder %v399, 0.0
  %v430 = vsel %vm429, 0.0, %v428
  %v431 = vsel %vm57, %v430, 0.0
  %v432 = vrot.slane %v431, 4
  %v433 = vadd.f32 %v431, %v432
  %v434 = vrot.slane %v433, 2
  %v435 = vadd.f32 %v433, %v434
  %v436 = vrot.slane %v435, 1
  %v437 = vadd.f32 %v435, %v436
  %v438 = vmul.f32 %v437, %v65
  %v439 = vadd.f32 %v412, %v425
  %v440 = vadd.f32 %v439, %v438
  %v441 = vrcp.pop 3.0
  %v442 = vmul.f32 %v440, %v441
  %v443 = vld [vmem:[%s6] sm:$0xff]
  %v444 = vld [vmem:[%s6 + $0x8] sm:$0xff]
  %v445 = vld [vmem:[%s6 + $0x10] sm:$0xff]
  %v446 = vld [vmem:[%s6 + $0x18] sm:$0xff]
  %v447 = vld [vmem:[%s6 + $0x20] sm:$0xff]
  %v448 = vld [vmem:[%s6 + $0x28] sm:$0xff]
  %v449 = vld [vmem:[%s6 + $0x30] sm:$0xff]
  %v450 = vld [vmem:[%s6 + $0x38] sm:$0xff]
  %v451 = vld [vmem:[%s6 + $0x40] sm:$0xff]
  %v452 = vld [vmem:[%s6 + $0x48] sm:$0xff]
  %v453 = vld [vmem:[%s6 + $0x50] sm:$0xff]
  %v454 = vld [vmem:[%s6 + $0x58] sm:$0xff]
  %v455 = vld [vmem:[%s6 + $0x60] sm:$0xff]
  %v456 = vld [vmem:[%s6 + $0x68] sm:$0xff]
  %v457 = vld [vmem:[%s6 + $0x70] sm:$0xff]
  %v458 = vld [vmem:[%s6 + $0x78] sm:$0xff]
  %v459 = vld [vmem:[%s6 + $0x80] sm:$0xff]
  %v460 = vld [vmem:[%s6 + $0x88] sm:$0xff]
  %v461 = vld [vmem:[%s6 + $0x90] sm:$0xff]
  %v462 = vld [vmem:[%s6 + $0x98] sm:$0xff]
  %v463 = vld [vmem:[%s7] sm:$0xff]
  %v464 = vld [vmem:[%s7 + $0x8] sm:$0xff]
  %v465 = vld [vmem:[%s7 + $0x10] sm:$0xff]
  %v466 = vld [vmem:[%s7 + $0x18] sm:$0xff]
  %v467 = vld [vmem:[%s7 + $0x20] sm:$0xff]
  %v468 = vld [vmem:[%s7 + $0x28] sm:$0xff]
  %v469 = vld [vmem:[%s7 + $0x30] sm:$0xff]
  %v470 = vld [vmem:[%s7 + $0x38] sm:$0xff]
  %v471 = vld [vmem:[%s7 + $0x40] sm:$0xff]
  %v472 = vld [vmem:[%s7 + $0x48] sm:$0xff]
  %v473 = vld [vmem:[%s7 + $0x50] sm:$0xff]
  %v474 = vld [vmem:[%s7 + $0x58] sm:$0xff]
  %v475 = vld [vmem:[%s7 + $0x60] sm:$0xff]
  %v476 = vld [vmem:[%s7 + $0x68] sm:$0xff]
  %v477 = vld [vmem:[%s7 + $0x70] sm:$0xff]
  %v478 = vld [vmem:[%s7 + $0x78] sm:$0xff]
  %v479 = vld [vmem:[%s7 + $0x80] sm:$0xff]
  %v480 = vld [vmem:[%s7 + $0x88] sm:$0xff]
  %v481 = vld [vmem:[%s7 + $0x90] sm:$0xff]
  %v482 = vld [vmem:[%s7 + $0x98] sm:$0xff]
  %v483 = vld [vmem:[%s8] sm:$0x3]
  %v484 = vsub.f32 %v463, %v443
  %v485 = vsub.f32 %v464, %v444
  %v486 = vsub.f32 %v465, %v445
  %v487 = vsub.f32 %v466, %v446
  %v488 = vsub.f32 %v467, %v447
  %v489 = vsub.f32 %v468, %v448
  %v490 = vsub.f32 %v469, %v449
  %v491 = vsub.f32 %v470, %v450
  %v492 = vsub.f32 %v471, %v451
  %v493 = vsub.f32 %v472, %v452
  %v494 = vsub.f32 %v473, %v453
  %v495 = vsub.f32 %v474, %v454
  %v496 = vsub.f32 %v475, %v455
  %v497 = vsub.f32 %v476, %v456
  %v498 = vsub.f32 %v477, %v457
  %v499 = vsub.f32 %v478, %v458
  %v500 = vsub.f32 %v479, %v459
  %v501 = vsub.f32 %v480, %v460
  %v502 = vsub.f32 %v481, %v461
  %v503 = vsub.f32 %v482, %v462
  %v504 = vmul.f32 %v484, %v484
  %v505 = vmul.f32 %v485, %v485
  %v506 = vmul.f32 %v486, %v486
  %v507 = vmul.f32 %v487, %v487
  %v508 = vmul.f32 %v488, %v488
  %v509 = vmul.f32 %v489, %v489
  %v510 = vmul.f32 %v490, %v490
  %v511 = vmul.f32 %v491, %v491
  %v512 = vmul.f32 %v492, %v492
  %v513 = vmul.f32 %v493, %v493
  %v514 = vmul.f32 %v494, %v494
  %v515 = vmul.f32 %v495, %v495
  %v516 = vmul.f32 %v496, %v496
  %v517 = vmul.f32 %v497, %v497
  %v518 = vmul.f32 %v498, %v498
  %v519 = vmul.f32 %v499, %v499
  %v520 = vmul.f32 %v500, %v500
  %v521 = vmul.f32 %v501, %v501
  %v522 = vmul.f32 %v502, %v502
  %v523 = vmul.f32 %v503, %v503
  %v524 = vsel %vm149, %v504, 0.0
  %525 = vadd.xlane.f32.xlu0 %v524
  %v526 = vpop.xlane.xlu0 %525
  %v527 = vsel %vm149, %v505, 0.0
  %528 = vadd.xlane.f32.xlu0 %v527
  %v529 = vpop.xlane.xlu0 %528
  %v530 = vsel %vm149, %v506, 0.0
  %531 = vadd.xlane.f32.xlu0 %v530
  %v532 = vpop.xlane.xlu0 %531
  %v533 = vsel %vm149, %v507, 0.0
  %534 = vadd.xlane.f32.xlu0 %v533
  %v535 = vpop.xlane.xlu0 %534
  %v536 = vsel %vm149, %v508, 0.0
  %537 = vadd.xlane.f32.xlu0 %v536
  %v538 = vpop.xlane.xlu0 %537
  %v539 = vsel %vm149, %v509, 0.0
  %540 = vadd.xlane.f32.xlu0 %v539
  %v541 = vpop.xlane.xlu0 %540
  %v542 = vsel %vm149, %v510, 0.0
  %543 = vadd.xlane.f32.xlu0 %v542
  %v544 = vpop.xlane.xlu0 %543
  %v545 = vsel %vm149, %v511, 0.0
  %546 = vadd.xlane.f32.xlu0 %v545
  %v547 = vpop.xlane.xlu0 %546
  %v548 = vsel %vm149, %v512, 0.0
  %549 = vadd.xlane.f32.xlu0 %v548
  %v550 = vpop.xlane.xlu0 %549
  %v551 = vsel %vm149, %v513, 0.0
  %552 = vadd.xlane.f32.xlu0 %v551
  %v553 = vpop.xlane.xlu0 %552
  %v554 = vsel %vm149, %v514, 0.0
  %555 = vadd.xlane.f32.xlu0 %v554
  %v556 = vpop.xlane.xlu0 %555
  %v557 = vsel %vm149, %v515, 0.0
  %558 = vadd.xlane.f32.xlu0 %v557
  %v559 = vpop.xlane.xlu0 %558
  %v560 = vsel %vm149, %v516, 0.0
  %561 = vadd.xlane.f32.xlu0 %v560
  %v562 = vpop.xlane.xlu0 %561
  %v563 = vsel %vm149, %v517, 0.0
  %564 = vadd.xlane.f32.xlu0 %v563
  %v565 = vpop.xlane.xlu0 %564
  %v566 = vsel %vm149, %v518, 0.0
  %567 = vadd.xlane.f32.xlu0 %v566
  %v568 = vpop.xlane.xlu0 %567
  %v569 = vsel %vm149, %v519, 0.0
  %570 = vadd.xlane.f32.xlu0 %v569
  %v571 = vpop.xlane.xlu0 %570
  %v572 = vsel %vm149, %v520, 0.0
  %573 = vadd.xlane.f32.xlu0 %v572
  %v574 = vpop.xlane.xlu0 %573
  %v575 = vsel %vm149, %v521, 0.0
  %576 = vadd.xlane.f32.xlu0 %v575
  %v577 = vpop.xlane.xlu0 %576
  %v578 = vsel %vm149, %v522, 0.0
  %579 = vadd.xlane.f32.xlu0 %v578
  %v580 = vpop.xlane.xlu0 %579
  %v581 = vsel %vm149, %v523, 0.0
  %582 = vadd.xlane.f32.xlu0 %v581
  %v583 = vpop.xlane.xlu0 %582
  %vm584 = vcmp.eq.f32.partialorder %v483, 0.0
  %v605 = vlaneseq
  %v606 = vshrl.u32 %v605, 7
  %v607 = vsub.s32 %v47, %v606
  %v608 = vrot.slane %v526, %v607
  %v609 = vlaneseq
  %v610 = vshrl.u32 %v609, 7
  %v611 = vsub.s32 %v235, %v610
  %v612 = vrot.slane %v529, %v611
  %v613 = vsel %vm240, %v612, %v608
  %v614 = vlaneseq
  %v615 = vshrl.u32 %v614, 7
  %v616 = vsub.s32 %v242, %v615
  %v617 = vrot.slane %v532, %v616
  %v618 = vsel %vm247, %v617, %v613
  %v619 = vlaneseq
  %v620 = vshrl.u32 %v619, 7
  %v621 = vsub.s32 %v249, %v620
  %v622 = vrot.slane %v535, %v621
  %v623 = vsel %vm254, %v622, %v618
  %v624 = vlaneseq
  %v625 = vshrl.u32 %v624, 7
  %v626 = vsub.s32 %v256, %v625
  %v627 = vrot.slane %v538, %v626
  %v628 = vsel %vm261, %v627, %v623
  %v629 = vlaneseq
  %v630 = vshrl.u32 %v629, 7
  %v631 = vsub.s32 %v263, %v630
  %v632 = vrot.slane %v541, %v631
  %v633 = vsel %vm268, %v632, %v628
  %v634 = vlaneseq
  %v635 = vshrl.u32 %v634, 7
  %v636 = vsub.s32 %v270, %v635
  %v637 = vrot.slane %v544, %v636
  %v638 = vsel %vm275, %v637, %v633
  %v639 = vlaneseq
  %v640 = vshrl.u32 %v639, 7
  %v641 = vsub.s32 %v277, %v640
  %v642 = vrot.slane %v547, %v641
  %v643 = vsel %vm282, %v642, %v638
  %v644 = vlaneseq
  %v645 = vshrl.u32 %v644, 7
  %v646 = vsub.s32 %v284, %v645
  %v647 = vrot.slane %v550, %v646
  %v648 = vsel %vm289, %v647, %v643
  %v649 = vlaneseq
  %v650 = vshrl.u32 %v649, 7
  %v651 = vsub.s32 %v291, %v650
  %v652 = vrot.slane %v553, %v651
  %v653 = vsel %vm296, %v652, %v648
  %v654 = vlaneseq
  %v655 = vshrl.u32 %v654, 7
  %v656 = vsub.s32 %v47, %v655
  %v657 = vrot.slane %v556, %v656
  %v658 = vlaneseq
  %v659 = vshrl.u32 %v658, 7
  %v660 = vsub.s32 %v235, %v659
  %v661 = vrot.slane %v559, %v660
  %v662 = vsel %vm240, %v661, %v657
  %v663 = vlaneseq
  %v664 = vshrl.u32 %v663, 7
  %v665 = vsub.s32 %v242, %v664
  %v666 = vrot.slane %v562, %v665
  %v667 = vsel %vm247, %v666, %v662
  %v668 = vlaneseq
  %v669 = vshrl.u32 %v668, 7
  %v670 = vsub.s32 %v249, %v669
  %v671 = vrot.slane %v565, %v670
  %v672 = vsel %vm254, %v671, %v667
  %v673 = vlaneseq
  %v674 = vshrl.u32 %v673, 7
  %v675 = vsub.s32 %v256, %v674
  %v676 = vrot.slane %v568, %v675
  %v677 = vsel %vm261, %v676, %v672
  %v678 = vlaneseq
  %v679 = vshrl.u32 %v678, 7
  %v680 = vsub.s32 %v263, %v679
  %v681 = vrot.slane %v571, %v680
  %v682 = vsel %vm268, %v681, %v677
  %v683 = vlaneseq
  %v684 = vshrl.u32 %v683, 7
  %v685 = vsub.s32 %v270, %v684
  %v686 = vrot.slane %v574, %v685
  %v687 = vsel %vm275, %v686, %v682
  %v688 = vlaneseq
  %v689 = vshrl.u32 %v688, 7
  %v690 = vsub.s32 %v277, %v689
  %v691 = vrot.slane %v577, %v690
  %v692 = vsel %vm282, %v691, %v687
  %v693 = vlaneseq
  %v694 = vshrl.u32 %v693, 7
  %v695 = vsub.s32 %v284, %v694
  %v696 = vrot.slane %v580, %v695
  %v697 = vsel %vm289, %v696, %v692
  %v698 = vlaneseq
  %v699 = vshrl.u32 %v698, 7
  %v700 = vsub.s32 %v291, %v699
  %v701 = vrot.slane %v583, %v700
  %v702 = vsel %vm296, %v701, %v697
  %v703 = vsel %vm347, %v702, %v653
  %v705 = vsel %vm584, 0.0, %v703
  %v706 = vadd.f32 %v705, 1e-08
  %v707 = vrsqrt.pop %v706
  %v708 = vmul.f32 %v706, %v707
  %vm709 = vcmp.eq.f32.partialorder %v706, inf
  %v710 = vsel %vm709, %v706, %v708
  %vm711 = vcmp.eq.f32.partialorder %v706, 0.0
  %v712 = vand.u32 %v706, 2147483648
  %v713 = vsel %vm711, %v712, %v710
  %v714 = vmul.f32 %v713, %v362
  %v715 = vsel %vm364, %v714, 0.0
  %716 = vadd.xlane.f32.xlu0 %v715
  %v717 = vpop.xlane.xlu0 %716
  %v718 = vmul.f32 %v483, %v362
  %v719 = vsel %vm364, %v718, 0.0
  %720 = vadd.xlane.f32.xlu0 %v719
  %v721 = vpop.xlane.xlu0 %720
  %v722 = vmul.f32 %v713, %v375
  %v723 = vsel %vm364, %v722, 0.0
  %724 = vadd.xlane.f32.xlu0 %v723
  %v725 = vpop.xlane.xlu0 %724
  %v726 = vmul.f32 %v483, %v375
  %v727 = vsel %vm364, %v726, 0.0
  %728 = vadd.xlane.f32.xlu0 %v727
  %v729 = vpop.xlane.xlu0 %728
  %v730 = vmul.f32 %v713, %v387
  %v731 = vsel %vm364, %v730, 0.0
  %732 = vadd.xlane.f32.xlu0 %v731
  %v733 = vpop.xlane.xlu0 %732
  %v734 = vmul.f32 %v483, %v387
  %v735 = vsel %vm364, %v734, 0.0
  %736 = vadd.xlane.f32.xlu0 %v735
  %v737 = vpop.xlane.xlu0 %736
  %v738 = vadd.f32 %v717, %v725
  %v739 = vadd.f32 %v721, %v729
  %v740 = vadd.f32 %v738, %v733
  %v741 = vadd.f32 %v739, %v737
  %v742 = vadd.f32 %v721, 1e-10
  %v743 = vrcp.pop %v742
  %v744 = vmul.f32 %v717, %v743
  %vm745 = vcmp.eq.f32.partialorder %v721, 0.0
  %v746 = vsel %vm745, 0.0, %v744
  %v747 = vsel %vm57, %v746, 0.0
  %v748 = vrot.slane %v747, 4
  %v749 = vadd.f32 %v747, %v748
  %v750 = vrot.slane %v749, 2
  %v751 = vadd.f32 %v749, %v750
  %v752 = vrot.slane %v751, 1
  %v753 = vadd.f32 %v751, %v752
  %v754 = vmul.f32 %v753, %v65
  %v755 = vadd.f32 %v739, 1e-10
  %v756 = vrcp.pop %v755
  %v757 = vmul.f32 %v738, %v756
  %vm758 = vcmp.eq.f32.partialorder %v739, 0.0
  %v759 = vsel %vm758, 0.0, %v757
  %v760 = vsel %vm57, %v759, 0.0
  %v761 = vrot.slane %v760, 4
  %v762 = vadd.f32 %v760, %v761
  %v763 = vrot.slane %v762, 2
  %v764 = vadd.f32 %v762, %v763
  %v765 = vrot.slane %v764, 1
  %v766 = vadd.f32 %v764, %v765
  %v767 = vmul.f32 %v766, %v65
  %v768 = vadd.f32 %v741, 1e-10
  %v769 = vrcp.pop %v768
  %v770 = vmul.f32 %v740, %v769
  %vm771 = vcmp.eq.f32.partialorder %v741, 0.0
  %v772 = vsel %vm771, 0.0, %v770
  %v773 = vsel %vm57, %v772, 0.0
  %v774 = vrot.slane %v773, 4
  %v775 = vadd.f32 %v773, %v774
  %v776 = vrot.slane %v775, 2
  %v777 = vadd.f32 %v775, %v776
  %v778 = vrot.slane %v777, 1
  %v779 = vadd.f32 %v777, %v778
  %v780 = vmul.f32 %v779, %v65
  %v781 = vadd.f32 %v754, %v767
  %v782 = vadd.f32 %v781, %v780
  %v783 = vmul.f32 %v782, %v441
  %v784 = vmul.f32 %v66, 0.5
  %v785 = vadd.f32 %v442, %v783
  %v786 = vmul.f32 %v785, 0.5
  %v787 = vadd.f32 %v784, %v786
  %v788 = vadd.f32 %v412, %v754
  %v789 = vmul.f32 %v788, 0.5
  %v790 = vadd.f32 %v425, %v767
  %v791 = vmul.f32 %v790, 0.5
  %v792 = vadd.f32 %v438, %v780
  %v793 = vmul.f32 %v792, 0.5
  %vm794 = vcmp.eq.s32.totalorder %v47, 0
  %v795 = vsel %vm794, %v787, 0.0
  %vm796 = vcmp.eq.s32.totalorder %v47, 1
  %v797 = vsel %vm796, %v66, %v795
  %vm798 = vcmp.eq.s32.totalorder %v47, 2
  %v799 = vsel %vm798, %v412, %v797
  %vm800 = vcmp.eq.s32.totalorder %v47, 3
  %v801 = vsel %vm800, %v425, %v799
  %vm802 = vcmp.eq.s32.totalorder %v47, 4
  %v803 = vsel %vm802, %v438, %v801
  %vm804 = vcmp.eq.s32.totalorder %v47, 5
  %v805 = vsel %vm804, %v442, %v803
  %vm806 = vcmp.eq.s32.totalorder %v47, 6
  %v807 = vsel %vm806, %v754, %v805
  %vm808 = vcmp.eq.s32.totalorder %v47, 7
  %v809 = vsel %vm808, %v767, %v807
  %vm810 = vcmp.eq.s32.totalorder %v47, 8
  %v811 = vsel %vm810, %v780, %v809
  %vm812 = vcmp.eq.s32.totalorder %v47, 9
  %v813 = vsel %vm812, %v783, %v811
  %vm814 = vcmp.eq.s32.totalorder %v47, 10
  %v815 = vsel %vm814, %v789, %v813
  %vm816 = vcmp.eq.s32.totalorder %v47, 11
  %v817 = vsel %vm816, %v791, %v815
  %vm818 = vcmp.eq.s32.totalorder %v47, 12
  %v819 = vsel %vm818, %v793, %v817
  %vm820 = vcmp.eq.s32.totalorder %v47, 13
  %v821 = vsel %vm820, %v786, %v819
  %vm822 = vcmask 122880
  %823 = vst.msk [vmem:[%s9] sm:$0x1] %vm822, %v821
  // Predicated region
  $region38: #{loss_forward.1} parent=0 // pred_check
    _
  $region39: #{loss_forward.1} parent=0 // pred_check_branch
    %825 = sbr.rel (0) target = $region41
  $region40: #{loss_forward.1} parent=0 // pred_region
    _
  $region41: #{loss_forward.1} parent=0 // pred_fallthru
    _
  // Predicated region
  $region42: #{loss_forward.1} parent=0 // pred_check
    _
  $region43: #{loss_forward.1} parent=0 // pred_check_branch
    %827 = sbr.rel (0) target = $region45
  $region44: #{loss_forward.1} parent=0 // pred_region
    _
  $region45: #{loss_forward.1} parent=0 // pred_fallthru
    _

</llo_original>
